<compile_context>
chip_gen: v6e
topology: v6e:2x2x1
jax: 0.10.0
libtpu: 0.0.40
codegen_flags: <defaults>
</compile_context>

<pallas_src>
import jax
import jax.numpy as jnp
from jax.experimental import pallas as pl
from jax.experimental.pallas import tpu as pltpu


_SQRT_2_OVER_PI = 0.7978845608028654


def _gelu_new(x):
    # GPT-2 "gelu_new": 0.5*x*(1+tanh(sqrt(2/pi)*(x+0.044715*x^3)))
    return 0.5 * x * (1.0 + jnp.tanh(_SQRT_2_OVER_PI * (x + 0.044715 * x * x * x)))


def _round_up(n, m):
    return ((n + m - 1) // m) * m


def _vmem_cap_bytes():
    """~78% of physical VMEM: ~100 MiB on 128-MiB parts, ~50 MiB on v7x."""
    try:
        cap = int(pltpu.get_tpu_info().vmem_capacity_bytes)
    except Exception:
        cap = 64 * 1024 * 1024  # conservative (v7x-sized) fallback
    return int(cap * 0.78)


def _mlp_resident_kernel(x_ref, w1_ref, b1_ref, w2_ref, b2_ref, o_ref):
    # x_ref:  (tm, I)  bf16 activation tile (cast in the wrapper)
    # w1_ref: (I, E)   c_fc weight, resident, single-buffered
    # b1_ref: (1, E)   c_fc bias (f32)
    # w2_ref: (E, I)   c_proj weight, resident, single-buffered
    # b2_ref: (1, I)   c_proj bias (f32)
    h = jnp.dot(x_ref[...], w1_ref[...], preferred_element_type=jnp.float32)
    h = h + b1_ref[...].astype(jnp.float32)
    h = _gelu_new(h)                                    # f32 gelu (EUP tanh)
    y = jnp.dot(h.astype(w2_ref.dtype), w2_ref[...],
                preferred_element_type=jnp.float32)
    y = y + b2_ref[...].astype(jnp.float32)
    # TODO(synk): training-mode dropout (p=0.1) would need pltpu.prng_seed /
    # prng_random_bits; inference-mode identity is implemented here.
    o_ref[...] = y.astype(o_ref.dtype)


def _mlp_chunked_kernel(x_ref, w1_ref, b1_ref, w2_ref, b2_ref, o_ref, acc_ref):
    # E-chunked reduction (v7x / big-weight fallback).
    # x_ref: (tm, I), w1_ref: (I, te), b1_ref: (1, te), w2_ref: (te, I),
    # b2_ref: (1, I), acc_ref: (tm, I) f32 accumulator.
    e = pl.program_id(1)

    @pl.when(e == 0)
    def _():
        acc_ref[...] = jnp.zeros_like(acc_ref)

    h = jnp.dot(x_ref[...], w1_ref[...], preferred_element_type=jnp.float32)
    h = h + b1_ref[...].astype(jnp.float32)
    h = _gelu_new(h)
    acc_ref[...] += jnp.dot(h.astype(w2_ref.dtype), w2_ref[...],
                            preferred_element_type=jnp.float32)

    @pl.when(e == pl.num_programs(1) - 1)
    def _():
        y = acc_ref[...] + b2_ref[...].astype(jnp.float32)
        o_ref[...] = y.astype(o_ref.dtype)


def mlp_forward(x, w1, b1, w2, b2, *, tm=512, matmul_dtype=jnp.bfloat16,
                out_dtype=None, force_chunked=False, te=None):
    """x: (B, S, I). w1: (I, E), b1: (E,), w2: (E, I), b2: (I,). Returns (B, S, I)."""
    B, S, I = x.shape
    I_w, E = w1.shape
    assert I_w == I and w2.shape == (E, I) and b1.shape == (E,) and b2.shape == (I,)
    out_dtype = x.dtype if out_dtype is None else out_dtype
    M = B * S

    # Row tile: MXU/megacore-friendly granule of 128, clamped to M, and split
    # so mid-sized M still produces >= 2 grid steps (keeps both v7x TCs busy).
    row_granule = 128
    tm_eff = min(tm, _round_up(M, row_granule))
    if M > 2 * row_granule:
        tm_eff = min(tm_eff, _round_up(-(-M // 2), row_granule))
    M_pad = _round_up(M, tm_eff)
    grid_m = M_pad // tm_eff

    # Cast activations in the wrapper: halves x-in DMA bytes (mem-bound regime),
    # numerically identical since the MXU operand was already bf16.
    x2d = x.reshape(M, I).astype(matmul_dtype)
    if M_pad != M:
        x2d = jnp.pad(x2d, ((0, M_pad - M), (0, 0)))

    w1_c = w1.astype(matmul_dtype)
    w2_c = w2.astype(matmul_dtype)
    b1_2d = b1.reshape(1, E).astype(jnp.float32)
    b2_2d = b2.reshape(1, I).astype(jnp.float32)

    w_bytes = jnp.dtype(matmul_dtype).itemsize
    act_bytes = jnp.dtype(matmul_dtype).itemsize
    out_bytes = jnp.dtype(out_dtype).itemsize
    vmem_cap = _vmem_cap_bytes()

    # Resident-weight VMEM need, including internal temporaries.
    resident_need = (
        (I * E + E * I) * w_bytes          # single-buffered weights
        + (E + I) * 4                      # biases (f32)
        + 2 * tm_eff * I * act_bytes       # double-buffered x tiles
        + 2 * tm_eff * I * out_bytes       # double-buffered out tiles
        + tm_eff * E * 4                   # f32 h
        + tm_eff * E * act_bytes           # bf16 copy of h for 2nd matmul
        + 2 * tm_eff * E * 4               # gelu temporaries
        + tm_eff * I * 4                   # f32 y before cast
    )
    use_chunked = force_chunked or (int(1.25 * resident_need) > vmem_cap)

    if use_chunked:
        if te is None:
            te = E
            for cand in (2048, 1024, 512, 256, 128):
                if E % cand == 0:
                    te = cand
                    break
        assert E % te == 0, "E-chunk size must divide E"
        grid_e = E // te
        chunked_need = (
            2 * (I * te + te * I) * w_bytes   # double-buffered weight chunks
            + 2 * 2 * te * 4 + I * 4          # bias chunks + b2
            + 2 * tm_eff * I * act_bytes      # x tiles
            + 2 * tm_eff * I * out_bytes      # out tiles
            + tm_eff * I * 4                  # f32 accumulator scratch
            + 3 * tm_eff * te * 4             # f32 h chunk + gelu temporaries
            + tm_eff * te * act_bytes         # bf16 copy of h chunk
        )
        vmem_limit = int(min(max(int(1.5 * chunked_need), 32 * 1024 * 1024), vmem_cap))
        weight_stream_factor = grid_m         # weights re-streamed per M tile
    else:
        grid_e = 1
        vmem_limit = int(min(max(int(1.5 * resident_need), 32 * 1024 * 1024), vmem_cap))
        weight_stream_factor = 1

    cost = pl.CostEstimate(
        flops=4 * M_pad * I * E,                           # two matmuls
        transcendentals=M_pad * E,                         # tanh in gelu
        bytes_accessed=(M_pad * I * act_bytes              # x in (bf16)
                        + M_pad * I * out_bytes            # y out
                        + (I * E + E * I) * w_bytes * weight_stream_factor
                        + (E + I) * 4),                    # biases
    )

    if not use_chunked:
        # Constant index_map -> keep a single resident copy of each weight/bias.
        single_buf = dict(pipeline_mode=pl.Buffered(1))
        out = pl.pallas_call(
            _mlp_resident_kernel,
            out_shape=jax.ShapeDtypeStruct((M_pad, I), out_dtype),
            grid_spec=pltpu.PrefetchScalarGridSpec(
                num_scalar_prefetch=0,
                grid=(grid_m,),
                in_specs=[
                    pl.BlockSpec((tm_eff, I), lambda i: (i, 0)),           # x tile
                    pl.BlockSpec((I, E), lambda i: (0, 0), **single_buf),  # W1
                    pl.BlockSpec((1, E), lambda i: (0, 0), **single_buf),  # b1
                    pl.BlockSpec((E, I), lambda i: (0, 0), **single_buf),  # W2
                    pl.BlockSpec((1, I), lambda i: (0, 0), **single_buf),  # b2
                ],
                out_specs=pl.BlockSpec((tm_eff, I), lambda i: (i, 0)),
            ),
            compiler_params=pltpu.CompilerParams(
                dimension_semantics=("parallel",),
                vmem_limit_bytes=vmem_limit,
            ),
            cost_estimate=cost,
        )(x2d, w1_c, b1_2d, w2_c, b2_2d)
    else:
        out = pl.pallas_call(
            _mlp_chunked_kernel,
            out_shape=jax.ShapeDtypeStruct((M_pad, I), out_dtype),
            grid_spec=pltpu.PrefetchScalarGridSpec(
                num_scalar_prefetch=0,
                grid=(grid_m, grid_e),
                in_specs=[
                    pl.BlockSpec((tm_eff, I), lambda i, e: (i, 0)),  # x tile (reused across e)
                    pl.BlockSpec((I, te), lambda i, e: (0, e)),      # W1 chunk
                    pl.BlockSpec((1, te), lambda i, e: (0, e)),      # b1 chunk
                    pl.BlockSpec((te, I), lambda i, e: (e, 0)),      # W2 chunk
                    pl.BlockSpec((1, I), lambda i, e: (0, 0)),       # b2
                ],
                out_specs=pl.BlockSpec((tm_eff, I), lambda i, e: (i, 0)),
                scratch_shapes=[pltpu.VMEM((tm_eff, I), jnp.float32)],
            ),
            compiler_params=pltpu.CompilerParams(
                dimension_semantics=("parallel", "arbitrary"),
                vmem_limit_bytes=vmem_limit,
            ),
            cost_estimate=cost,
        )(x2d, w1_c, b1_2d, w2_c, b2_2d)

    return out[:M].reshape(B, S, I)


if __name__ == "__main__":
    # Small shapes implied by the module: intermediate_size=256, hidden_size=128.
    B, S = 2, 8
    INTERMEDIATE = 256
    EMBED = 128

    key = jax.random.PRNGKey(0)
    kx, k1, k2, k3, k4 = jax.random.split(key, 5)

    x = jax.random.normal(kx, (B, S, INTERMEDIATE), dtype=jnp.float32)

    # nn.Linear-like scale, stored as (in_features, out_features).
    w1 = jax.random.normal(k1, (INTERMEDIATE, EMBED), dtype=jnp.float32) * 0.02
    b1 = jax.random.normal(k2, (EMBED,), dtype=jnp.float32) * 0.02
    w2 = jax.random.normal(k3, (EMBED, INTERMEDIATE), dtype=jnp.float32) * 0.02
    b2 = jax.random.normal(k4, (INTERMEDIATE,), dtype=jnp.float32) * 0.02

    def ref_mixed(x, w1, b1, w2, b2):
        # Same bf16-operand / f32-accumulate recipe as the kernel.
        bf = jnp.bfloat16
        h = jnp.dot(x.astype(bf), w1.astype(bf),
                    preferred_element_type=jnp.float32) + b1
        h = _gelu_new(h)
        y = jnp.dot(h.astype(bf), w2.astype(bf),
                    preferred_element_type=jnp.float32) + b2
        return y.astype(jnp.float32)

    # Path 1: resident-weight kernel (chosen automatically at these sizes).
    y = mlp_forward(x, w1, b1, w2, b2)
    jax.block_until_ready(y)
    assert y.shape == (B, S, INTERMEDIATE)
    ref = ref_mixed(x, w1, b1, w2, b2)
    assert jnp.allclose(y, ref, atol=2e-3, rtol=2e-3), float(jnp.max(jnp.abs(y - ref)))

    # Loose sanity check against the pure-f32 math (bf16 operand rounding only).
    ref32 = jnp.dot(x, w1) + b1
    ref32 = _gelu_new(ref32)
    ref32 = jnp.dot(ref32, w2) + b2
    assert jnp.max(jnp.abs(y - ref32)) < 5e-2

    # Path 2: E-chunked reduction kernel (the v7x big-weight fallback), forced
    # with a larger embed dim so the reduction axis has 2 steps.
    E2 = 256
    kk = jax.random.split(jax.random.PRNGKey(1), 4)
    w1b = jax.random.normal(kk[0], (INTERMEDIATE, E2), jnp.float32) * 0.02
    b1b = jax.random.normal(kk[1], (E2,), jnp.float32) * 0.02
    w2b = jax.random.normal(kk[2], (E2, INTERMEDIATE), jnp.float32) * 0.02
    b2b = jax.random.normal(kk[3], (INTERMEDIATE,), jnp.float32) * 0.02
    y2 = mlp_forward(x, w1b, b1b, w2b, b2b, force_chunked=True, te=128)
    jax.block_until_ready(y2)
    assert y2.shape == (B, S, INTERMEDIATE)
    ref2 = ref_mixed(x, w1b, b1b, w2b, b2b)
    assert jnp.allclose(y2, ref2, atol=2e-3, rtol=2e-3), float(jnp.max(jnp.abs(y2 - ref2)))

    print("KERNEL_OK")
</pallas_src>

<mosaic_0001>
module attributes {stable_mosaic.version = 11 : i64} {
  func.func @_mlp_resident_kernel(%arg0: i32, %arg1: memref<128x256xbf16, #tpu.memory_space<vmem>>, %arg2: memref<256x128xbf16, #tpu.memory_space<vmem>>, %arg3: memref<1x128xf32, #tpu.memory_space<vmem>>, %arg4: memref<128x256xbf16, #tpu.memory_space<vmem>>, %arg5: memref<1x256xf32, #tpu.memory_space<vmem>>, %arg6: memref<128x256xf32, #tpu.memory_space<vmem>>) attributes {dimension_semantics = [#tpu.dimension_semantics<parallel>], iteration_bounds = array<i64: 1>, scalar_prefetch = 0 : i64, scratch_operands = 0 : i64, tpu.core_type = #tpu.core_type<tc>, window_params = [{transform_indices = @transform_0, window_bounds = array<i64: 128, 256>}, {pipeline_mode = #tpu.pipeline_mode<synchronous>, transform_indices = @transform_1, window_bounds = array<i64: 256, 128>}, {pipeline_mode = #tpu.pipeline_mode<synchronous>, transform_indices = @transform_2, window_bounds = array<i64: 1, 128>}, {pipeline_mode = #tpu.pipeline_mode<synchronous>, transform_indices = @transform_3, window_bounds = array<i64: 128, 256>}, {pipeline_mode = #tpu.pipeline_mode<synchronous>, transform_indices = @transform_4, window_bounds = array<i64: 1, 256>}, {transform_indices = @transform_5, window_bounds = array<i64: 128, 256>}]} {
    %c0 = arith.constant 0 : index
    %c0_0 = arith.constant 0 : index
    %0 = vector.load %arg1[%c0, %c0_0] : memref<128x256xbf16, #tpu.memory_space<vmem>>, vector<128x256xbf16>
    %c0_1 = arith.constant 0 : index
    %c0_2 = arith.constant 0 : index
    %1 = vector.load %arg2[%c0_1, %c0_2] : memref<256x128xbf16, #tpu.memory_space<vmem>>, vector<256x128xbf16>
    %cst = arith.constant dense<0.000000e+00> : vector<128x128xf32>
    %2 = tpu.matmul %0, %1, %cst {dimension_numbers = #tpu.dot_dimension_numbers<[1], [0], [0], [1], [0, 0, 1, 1], [], []>} : vector<128x256xbf16>, vector<256x128xbf16>, vector<128x128xf32> -> vector<128x128xf32>
    %c0_3 = arith.constant 0 : index
    %c0_4 = arith.constant 0 : index
    %3 = vector.load %arg3[%c0_3, %c0_4] : memref<1x128xf32, #tpu.memory_space<vmem>>, vector<1x128xf32>
    %4 = vector.broadcast %3 : vector<1x128xf32> to vector<128x128xf32>
    %5 = arith.addf %2, %4 : vector<128x128xf32>
    %cst_5 = arith.constant 5.000000e-01 : f32
    %6 = vector.broadcast %cst_5 : f32 to vector<128x128xf32>
    %7 = arith.mulf %6, %5 : vector<128x128xf32>
    %cst_6 = arith.constant 4.471500e-02 : f32
    %8 = vector.broadcast %cst_6 : f32 to vector<128x128xf32>
    %9 = arith.mulf %8, %5 : vector<128x128xf32>
    %10 = arith.mulf %9, %5 : vector<128x128xf32>
    %11 = arith.mulf %10, %5 : vector<128x128xf32>
    %12 = arith.addf %5, %11 : vector<128x128xf32>
    %cst_7 = arith.constant 0.797884583 : f32
    %13 = vector.broadcast %cst_7 : f32 to vector<128x128xf32>
    %14 = arith.mulf %13, %12 : vector<128x128xf32>
    %15 = math.tanh %14 : vector<128x128xf32>
    %cst_8 = arith.constant 1.000000e+00 : f32
    %16 = vector.broadcast %cst_8 : f32 to vector<128x128xf32>
    %17 = arith.addf %16, %15 : vector<128x128xf32>
    %18 = arith.mulf %7, %17 : vector<128x128xf32>
    %19 = arith.truncf %18 : vector<128x128xf32> to vector<128x128xbf16>
    %c0_9 = arith.constant 0 : index
    %c0_10 = arith.constant 0 : index
    %20 = vector.load %arg4[%c0_9, %c0_10] : memref<128x256xbf16, #tpu.memory_space<vmem>>, vector<128x256xbf16>
    %cst_11 = arith.constant dense<0.000000e+00> : vector<128x256xf32>
    %21 = tpu.matmul %19, %20, %cst_11 {dimension_numbers = #tpu.dot_dimension_numbers<[1], [0], [0], [1], [0, 0, 1, 1], [], []>} : vector<128x128xbf16>, vector<128x256xbf16>, vector<128x256xf32> -> vector<128x256xf32>
    %c0_12 = arith.constant 0 : index
    %c0_13 = arith.constant 0 : index
    %22 = vector.load %arg5[%c0_12, %c0_13] : memref<1x256xf32, #tpu.memory_space<vmem>>, vector<1x256xf32>
    %23 = vector.broadcast %22 : vector<1x256xf32> to vector<128x256xf32>
    %24 = arith.addf %21, %23 : vector<128x256xf32>
    %c0_14 = arith.constant 0 : index
    %c0_15 = arith.constant 0 : index
    %25 = vector.load %arg6[%c0_14, %c0_15] : memref<128x256xf32, #tpu.memory_space<vmem>>, vector<128x256xf32>
    tpu.vector_store %arg6[%c0_14, %c0_15], %24 {strides = array<i32>} : memref<128x256xf32, #tpu.memory_space<vmem>>, vector<128x256xf32>,
    return
  }
  func.func @transform_0(%arg0: i32) -> (i32, i32) {
    %c0_i32 = arith.constant 0 : i32
    %c0_i32_0 = arith.constant 0 : i32
    return %arg0, %c0_i32 : i32, i32
  }
  func.func @transform_1(%arg0: i32) -> (i32, i32) {
    %c0_i32 = arith.constant 0 : i32
    %c0_i32_0 = arith.constant 0 : i32
    %c0_i32_1 = arith.constant 0 : i32
    return %c0_i32, %c0_i32_0 : i32, i32
  }
  func.func @transform_2(%arg0: i32) -> (i32, i32) {
    %c0_i32 = arith.constant 0 : i32
    %c0_i32_0 = arith.constant 0 : i32
    %c0_i32_1 = arith.constant 0 : i32
    return %c0_i32, %c0_i32_0 : i32, i32
  }
  func.func @transform_3(%arg0: i32) -> (i32, i32) {
    %c0_i32 = arith.constant 0 : i32
    %c0_i32_0 = arith.constant 0 : i32
    %c0_i32_1 = arith.constant 0 : i32
    return %c0_i32, %c0_i32_0 : i32, i32
  }
  func.func @transform_4(%arg0: i32) -> (i32, i32) {
    %c0_i32 = arith.constant 0 : i32
    %c0_i32_0 = arith.constant 0 : i32
    %c0_i32_1 = arith.constant 0 : i32
    return %c0_i32, %c0_i32_0 : i32, i32
  }
  func.func @transform_5(%arg0: i32) -> (i32, i32) {
    %c0_i32 = arith.constant 0 : i32
    %c0_i32_0 = arith.constant 0 : i32
    return %arg0, %c0_i32 : i32, i32
  }
}

</mosaic_0001>

<llo_original>
// kernel: tpu_custom_call.1
$region0: #{tpu_custom_call.1}
  #allocation0 [shape = 'u32[]', space=smem, size = 0x4, offset = 0x4, fixed_abs, tag = 'smem constant byte address 0x4 - core index']
  #allocation1 [shape = 'u32[144,128]{1,0:T(1,128)}', space=vmem, size = 0x12000, scoped, tag = 'internal scratch']
  %s0 = inlined_call_operand.hbm [shape: bf16[128,256], index: 0, kind: input, shape index: {}]
  %s1 = inlined_call_operand.hbm [shape: bf16[256,128], index: 1, kind: input, shape index: {}]
  %s2 = inlined_call_operand.vmem [shape: f32[1,128], index: 2, kind: input, shape index: {}]
  %s3 = inlined_call_operand.hbm [shape: bf16[128,256], index: 3, kind: input, shape index: {}]
  %s4 = inlined_call_operand.vmem [shape: f32[1,256], index: 4, kind: input, shape index: {}]
  %s5 = inlined_call_operand.hbm [shape: f32[128,256], index: 5, kind: output, shape index: {}]
  %s6 = sld [smem:[#allocation0]]
  $region42: #{tpu_custom_call.1} parent=0
    _
  %s8 = ssub.s32 1, %s6
  %s9 = scalar_select 0, %s8, %s6
  $region1: #{tpu_custom_call.1} parent=0
    #allocation2 [shape = 'u8[65536]{0}', space=vmem, size = 0x10000, scoped, tag = 'input window, operand 0, single buffered']
    #allocation3 [shape = 's32[1]{0}', space=sflag, size = 0x4, scoped, tag = 'scoped memory for tpu_custom_call.1']
    #allocation4 [shape = 's32[1]{0}', space=sflag, size = 0x4, scoped, tag = 'scoped memory for tpu_custom_call.1']
    #allocation5 [shape = 'u8[65536]{0}', space=vmem, size = 0x10000, scoped, tag = 'input window, operand 1, single buffered']
    #allocation6 [shape = 's32[1]{0}', space=sflag, size = 0x4, scoped, tag = 'scoped memory for tpu_custom_call.1']
    #allocation7 [shape = 'u8[65536]{0}', space=vmem, size = 0x10000, scoped, tag = 'input window, operand 3, single buffered']
    #allocation8 [shape = 'u8[131072]{0}', space=vmem, size = 0x20000, scoped, tag = 'output window, operand 0, single buffered']
    %10 = vsyncpa [#allocation3], 0
    %11 = vsyncpa [#allocation6], 0
    %12 = vsyncpa [#allocation4], 0
    // Predicated region
    $region2: #{tpu_custom_call.1} parent=1 // pred_check
      _
    $region3: #{tpu_custom_call.1} parent=1 // pred_check_branch
      %14 = sbr.rel (0) target = $region5
    $region4: #{tpu_custom_call.1} parent=1 // pred_region
      %s16 = ssub.s32 2048, 2048
      %17 = vsyncadd [#allocation3], %s16
      %s18 = sshll.u32 [#allocation2], 4
      %s19 = int_to_ptr.vmem [resolvable:$true] %s18
      %24 = dma.hbm_to_vmem [thread:$0]  %s0, 2048, %s19, [#allocation3], 128, 128, 8
    $region5: #{tpu_custom_call.1} parent=1 // pred_fallthru
      _
    // Predicated region
    $region6: #{tpu_custom_call.1} parent=1 // pred_check
      _
    $region7: #{tpu_custom_call.1} parent=1 // pred_check_branch
      %26 = sbr.rel (0) target = $region9
    $region8: #{tpu_custom_call.1} parent=1 // pred_region
      %s28 = ssub.s32 2048, 2048
      %29 = vsyncadd [#allocation6], %s28
      %s30 = sshll.u32 [#allocation5], 4
      %s31 = int_to_ptr.vmem [resolvable:$true] %s30
      %36 = dma.hbm_to_vmem [thread:$0]  %s1, 2048, %s31, [#allocation6], 64, 64, 4
    $region9: #{tpu_custom_call.1} parent=1 // pred_fallthru
      _
    // Predicated region
    $region10: #{tpu_custom_call.1} parent=1 // pred_check
      _
    $region11: #{tpu_custom_call.1} parent=1 // pred_check_branch
      %38 = sbr.rel (0) target = $region13
    $region12: #{tpu_custom_call.1} parent=1 // pred_region
      _
    $region13: #{tpu_custom_call.1} parent=1 // pred_fallthru
      _
    // Predicated region
    $region14: #{tpu_custom_call.1} parent=1 // pred_check
      _
    $region15: #{tpu_custom_call.1} parent=1 // pred_check_branch
      %40 = sbr.rel (0) target = $region17
    $region16: #{tpu_custom_call.1} parent=1 // pred_region
      %s42 = ssub.s32 2048, 2048
      %43 = vsyncadd [#allocation6], %s42
      %s44 = sshll.u32 [#allocation7], 4
      %s45 = int_to_ptr.vmem [resolvable:$true] %s44
      %50 = dma.hbm_to_vmem [thread:$0]  %s3, 2048, %s45, [#allocation6], 128, 128, 8
    $region17: #{tpu_custom_call.1} parent=1 // pred_fallthru
      _
    // Predicated region
    $region18: #{tpu_custom_call.1} parent=1 // pred_check
      _
    $region19: #{tpu_custom_call.1} parent=1 // pred_check_branch
      %52 = sbr.rel (0) target = $region21
    $region20: #{tpu_custom_call.1} parent=1 // pred_region
      _
    $region21: #{tpu_custom_call.1} parent=1 // pred_fallthru
      _
    // Predicated region
    $region22: #{tpu_custom_call.1} parent=1 // pred_check
      _
    $region23: #{tpu_custom_call.1} parent=1 // pred_check_branch
      %54 = sbr.rel (0) target = $region25
    $region24: #{tpu_custom_call.1} parent=1 // pred_region
      %55 = dma.done [#allocation3], 2048
    $region25: #{tpu_custom_call.1} parent=1 // pred_fallthru
      _
    // Predicated region
    $region26: #{tpu_custom_call.1} parent=1 // pred_check
      _
    $region27: #{tpu_custom_call.1} parent=1 // pred_check_branch
      %57 = sbr.rel (0) target = $region29
    $region28: #{tpu_custom_call.1} parent=1 // pred_region
      %58 = dma.done [#allocation6], 2048
    $region29: #{tpu_custom_call.1} parent=1 // pred_fallthru
      _
    // Predicated region
    $region30: #{tpu_custom_call.1} parent=1 // pred_check
      _
    $region31: #{tpu_custom_call.1} parent=1 // pred_check_branch
      %60 = sbr.rel (0) target = $region33
    $region32: #{tpu_custom_call.1} parent=1 // pred_region
      %61 = dma.done [#allocation6], 2048
    $region33: #{tpu_custom_call.1} parent=1 // pred_fallthru
      _
    %v63 = vld [vmem:[#allocation2] sm:$0xff]
    %v64 = vld [vmem:[#allocation2 + $0x8] sm:$0xff]
    %v65 = vld [vmem:[#allocation2 + $0x10] sm:$0xff]
    %v66 = vld [vmem:[#allocation2 + $0x18] sm:$0xff]
    %v67 = vld [vmem:[#allocation2 + $0x20] sm:$0xff]
    %v68 = vld [vmem:[#allocation2 + $0x28] sm:$0xff]
    %v69 = vld [vmem:[#allocation2 + $0x30] sm:$0xff]
    %v70 = vld [vmem:[#allocation2 + $0x38] sm:$0xff]
    %v71 = vld [vmem:[#allocation2 + $0x40] sm:$0xff]
    %v72 = vld [vmem:[#allocation2 + $0x48] sm:$0xff]
    %v73 = vld [vmem:[#allocation2 + $0x50] sm:$0xff]
    %v74 = vld [vmem:[#allocation2 + $0x58] sm:$0xff]
    %v75 = vld [vmem:[#allocation2 + $0x60] sm:$0xff]
    %v76 = vld [vmem:[#allocation2 + $0x68] sm:$0xff]
    %v77 = vld [vmem:[#allocation2 + $0x70] sm:$0xff]
    %v78 = vld [vmem:[#allocation2 + $0x78] sm:$0xff]
    %v79 = vld [vmem:[#allocation5] sm:$0xf]
    %v80 = vld [vmem:[#allocation5 + $0x4] sm:$0xf]
    %v81 = vld [vmem:[#allocation5 + $0x8] sm:$0xf]
    %v82 = vld [vmem:[#allocation5 + $0xc] sm:$0xf]
    %v83 = vld [vmem:[#allocation5 + $0x10] sm:$0xf]
    %v84 = vld [vmem:[#allocation5 + $0x14] sm:$0xf]
    %v85 = vld [vmem:[#allocation5 + $0x18] sm:$0xf]
    %v86 = vld [vmem:[#allocation5 + $0x1c] sm:$0xf]
    %v87 = vld [vmem:[#allocation5 + $0x20] sm:$0xf]
    %v88 = vld [vmem:[#allocation5 + $0x24] sm:$0xf]
    %v89 = vld [vmem:[#allocation5 + $0x28] sm:$0xf]
    %v90 = vld [vmem:[#allocation5 + $0x2c] sm:$0xf]
    %v91 = vld [vmem:[#allocation5 + $0x30] sm:$0xf]
    %v92 = vld [vmem:[#allocation5 + $0x34] sm:$0xf]
    %v93 = vld [vmem:[#allocation5 + $0x38] sm:$0xf]
    %v94 = vld [vmem:[#allocation5 + $0x3c] sm:$0xf]
    %v95 = vld [vmem:[#allocation5 + $0x40] sm:$0xf]
    %v96 = vld [vmem:[#allocation5 + $0x44] sm:$0xf]
    %v97 = vld [vmem:[#allocation5 + $0x48] sm:$0xf]
    %v98 = vld [vmem:[#allocation5 + $0x4c] sm:$0xf]
    %v99 = vld [vmem:[#allocation5 + $0x50] sm:$0xf]
    %v100 = vld [vmem:[#allocation5 + $0x54] sm:$0xf]
    %v101 = vld [vmem:[#allocation5 + $0x58] sm:$0xf]
    %v102 = vld [vmem:[#allocation5 + $0x5c] sm:$0xf]
    %v103 = vld [vmem:[#allocation5 + $0x60] sm:$0xf]
    %v104 = vld [vmem:[#allocation5 + $0x64] sm:$0xf]
    %v105 = vld [vmem:[#allocation5 + $0x68] sm:$0xf]
    %v106 = vld [vmem:[#allocation5 + $0x6c] sm:$0xf]
    %v107 = vld [vmem:[#allocation5 + $0x70] sm:$0xf]
    %v108 = vld [vmem:[#allocation5 + $0x74] sm:$0xf]
    %v109 = vld [vmem:[#allocation5 + $0x78] sm:$0xf]
    %v110 = vld [vmem:[#allocation5 + $0x7c] sm:$0xf]
    %v111 = vld [vmem:[%s2] sm:$0x1]
    %v113 = vlaneseq
    %v114 = vshrl.u32 %v113, 7
    %v115 = vsub.s32 0, %v114
    %v116 = vrot.slane %v111, %v115
    %v134 = vunpack.c.l.b16 %v63
    %v135 = vunpack.c.h.b16 %v63
    %v136 = vunpack.c.l.b16 %v64
    %v137 = vunpack.c.h.b16 %v64
    %v138 = vunpack.c.l.b16 %v65
    %v139 = vunpack.c.h.b16 %v65
    %v140 = vunpack.c.l.b16 %v66
    %v141 = vunpack.c.h.b16 %v66
    %v142 = vunpack.c.l.b16 %v67
    %v143 = vunpack.c.h.b16 %v67
    %v144 = vunpack.c.l.b16 %v68
    %v145 = vunpack.c.h.b16 %v68
    %v146 = vunpack.c.l.b16 %v69
    %v147 = vunpack.c.h.b16 %v69
    %v148 = vunpack.c.l.b16 %v70
    %v149 = vunpack.c.h.b16 %v70
    %v150 = vunpack.c.l.b16 %v71
    %v151 = vunpack.c.h.b16 %v71
    %v152 = vunpack.c.l.b16 %v72
    %v153 = vunpack.c.h.b16 %v72
    %v154 = vunpack.c.l.b16 %v73
    %v155 = vunpack.c.h.b16 %v73
    %v156 = vunpack.c.l.b16 %v74
    %v157 = vunpack.c.h.b16 %v74
    %v158 = vunpack.c.l.b16 %v75
    %v159 = vunpack.c.h.b16 %v75
    %v160 = vunpack.c.l.b16 %v76
    %v161 = vunpack.c.h.b16 %v76
    %v162 = vunpack.c.l.b16 %v77
    %v163 = vunpack.c.h.b16 %v77
    %v164 = vunpack.c.l.b16 %v78
    %v165 = vunpack.c.h.b16 %v78
    %v166 = vpack.c.b16 %v136, %v134
    %v167 = vpack.c.b16 %v137, %v135
    %v168 = vpack.c.b16 %v140, %v138
    %v169 = vpack.c.b16 %v141, %v139
    %v170 = vpack.c.b16 %v144, %v142
    %v171 = vpack.c.b16 %v145, %v143
    %v172 = vpack.c.b16 %v148, %v146
    %v173 = vpack.c.b16 %v149, %v147
    %v174 = vpack.c.b16 %v152, %v150
    %v175 = vpack.c.b16 %v153, %v151
    %v176 = vpack.c.b16 %v156, %v154
    %v177 = vpack.c.b16 %v157, %v155
    %v178 = vpack.c.b16 %v160, %v158
    %v179 = vpack.c.b16 %v161, %v159
    %v180 = vpack.c.b16 %v164, %v162
    %v181 = vpack.c.b16 %v165, %v163
    %v230 = vunpack.c.l.b16 %v79
    %v231 = vunpack.c.l.b16 %v80
    %v232 = vunpack.c.l.b16 %v81
    %v233 = vunpack.c.l.b16 %v82
    %v234 = vunpack.c.l.b16 %v83
    %v235 = vunpack.c.l.b16 %v84
    %v236 = vunpack.c.l.b16 %v85
    %v237 = vunpack.c.l.b16 %v86
    %v238 = vunpack.c.l.b16 %v87
    %v239 = vunpack.c.l.b16 %v88
    %v240 = vunpack.c.l.b16 %v89
    %v241 = vunpack.c.l.b16 %v90
    %v242 = vunpack.c.l.b16 %v91
    %v243 = vunpack.c.l.b16 %v92
    %v244 = vunpack.c.l.b16 %v93
    %v245 = vunpack.c.l.b16 %v94
    %v246 = vunpack.c.l.b16 %v95
    %v247 = vunpack.c.l.b16 %v96
    %v248 = vunpack.c.l.b16 %v97
    %v249 = vunpack.c.l.b16 %v98
    %v250 = vunpack.c.l.b16 %v99
    %v251 = vunpack.c.l.b16 %v100
    %v252 = vunpack.c.l.b16 %v101
    %v253 = vunpack.c.l.b16 %v102
    %v254 = vunpack.c.l.b16 %v103
    %v255 = vunpack.c.l.b16 %v104
    %v256 = vunpack.c.l.b16 %v105
    %v257 = vunpack.c.l.b16 %v106
    %v258 = vunpack.c.l.b16 %v107
    %v259 = vunpack.c.l.b16 %v108
    %v260 = vunpack.c.l.b16 %v109
    %v261 = vunpack.c.l.b16 %v110
    %v262 = vpack.c.b16 %v231, %v230
    %v263 = vpack.c.b16 %v233, %v232
    %v264 = vpack.c.b16 %v235, %v234
    %v265 = vpack.c.b16 %v237, %v236
    %v266 = vpack.c.b16 %v239, %v238
    %v267 = vpack.c.b16 %v241, %v240
    %v268 = vpack.c.b16 %v243, %v242
    %v269 = vpack.c.b16 %v245, %v244
    %v270 = vpack.c.b16 %v247, %v246
    %v271 = vpack.c.b16 %v249, %v248
    %v272 = vpack.c.b16 %v251, %v250
    %v273 = vpack.c.b16 %v253, %v252
    %v274 = vpack.c.b16 %v255, %v254
    %v275 = vpack.c.b16 %v257, %v256
    %v276 = vpack.c.b16 %v259, %v258
    %v277 = vpack.c.b16 %v261, %v260
    %294 = vmatprep.subr.bf16.mxu0 0
    %295 = vmatpush1.bf16.msra.mxu0 %v269
    %296 = vmatprep.subr.bf16.mxu0 0
    %297 = vmatpush1.bf16.msra.mxu0 %v268
    %298 = vmatprep.subr.bf16.mxu0 0
    %299 = vmatpush1.bf16.msra.mxu0 %v267
    %300 = vmatprep.subr.bf16.mxu0 0
    %301 = vmatpush1.bf16.msra.mxu0 %v266
    %302 = vmatprep.subr.bf16.mxu0 0
    %303 = vmatpush1.bf16.msra.mxu0 %v265
    %304 = vmatprep.subr.bf16.mxu0 0
    %305 = vmatpush1.bf16.msra.mxu0 %v264
    %306 = vmatprep.subr.bf16.mxu0 0
    %307 = vmatpush1.bf16.msra.mxu0 %v263
    %308 = vmatprep.subr.bf16.mxu0 0
    %309 = vmatpush1.bf16.msra.mxu0 %v262
    %310 = vmatprep.subr.bf16.mxu0 0
    %311 = vmatpush2.bf16.msra.mxu0 %v277
    %312 = vmatprep.subr.bf16.mxu0 0
    %313 = vmatpush2.bf16.msra.mxu0 %v276
    %314 = vmatprep.subr.bf16.mxu0 0
    %315 = vmatpush2.bf16.msra.mxu0 %v275
    %316 = vmatprep.subr.bf16.mxu0 0
    %317 = vmatpush2.bf16.msra.mxu0 %v274
    %318 = vmatprep.subr.bf16.mxu0 0
    %319 = vmatpush2.bf16.msra.mxu0 %v273
    %320 = vmatprep.subr.bf16.mxu0 0
    %321 = vmatpush2.bf16.msra.mxu0 %v272
    %322 = vmatprep.subr.bf16.mxu0 0
    %323 = vmatpush2.bf16.msra.mxu0 %v271
    %324 = vmatprep.subr.bf16.mxu0 0
    %325 = vmatpush2.bf16.msra.mxu0 %v270
    %326 = vmatprep.mubr.bf16.mxu0 %v167
    %327 = vmatmul.mubr.bf16.gmra.mxu0 %v166
    %v328 = vpop.f32.mrf.mxu0
    %v329 = vadd.f32 %v116, %v328
    %v330 = vpop.f32.mrf.mxu0
    %v331 = vpop.f32.mrf.mxu0
    %v332 = vadd.f32 %v116, %v331
    %v333 = vpop.f32.mrf.mxu0
    %334 = vmatprep.mubr.bf16.mxu0 %v169
    %335 = vmatmul.mubr.bf16.gmra.mxu0 %v168
    %v336 = vpop.f32.mrf.mxu0
    %v337 = vadd.f32 %v116, %v336
    %v338 = vpop.f32.mrf.mxu0
    %v339 = vpop.f32.mrf.mxu0
    %v340 = vadd.f32 %v116, %v339
    %v341 = vpop.f32.mrf.mxu0
    %342 = vmatprep.mubr.bf16.mxu0 %v171
    %343 = vmatmul.mubr.bf16.gmra.mxu0 %v170
    %v344 = vpop.f32.mrf.mxu0
    %v345 = vadd.f32 %v116, %v344
    %v346 = vpop.f32.mrf.mxu0
    %v347 = vpop.f32.mrf.mxu0
    %v348 = vadd.f32 %v116, %v347
    %v349 = vpop.f32.mrf.mxu0
    %350 = vmatprep.mubr.bf16.mxu0 %v173
    %351 = vmatmul.mubr.bf16.gmra.mxu0 %v172
    %v352 = vpop.f32.mrf.mxu0
    %v353 = vadd.f32 %v116, %v352
    %v354 = vpop.f32.mrf.mxu0
    %v355 = vpop.f32.mrf.mxu0
    %v356 = vadd.f32 %v116, %v355
    %v357 = vpop.f32.mrf.mxu0
    %358 = vmatprep.mubr.bf16.mxu0 %v175
    %359 = vmatmul.mubr.bf16.gmra.mxu0 %v174
    %v360 = vpop.f32.mrf.mxu0
    %v361 = vadd.f32 %v116, %v360
    %v362 = vpop.f32.mrf.mxu0
    %v363 = vpop.f32.mrf.mxu0
    %v364 = vadd.f32 %v116, %v363
    %v365 = vpop.f32.mrf.mxu0
    %366 = vmatprep.mubr.bf16.mxu0 %v177
    %367 = vmatmul.mubr.bf16.gmra.mxu0 %v176
    %v368 = vpop.f32.mrf.mxu0
    %v369 = vadd.f32 %v116, %v368
    %v370 = vpop.f32.mrf.mxu0
    %v371 = vpop.f32.mrf.mxu0
    %v372 = vadd.f32 %v116, %v371
    %v373 = vpop.f32.mrf.mxu0
    %374 = vmatprep.mubr.bf16.mxu0 %v179
    %375 = vmatmul.mubr.bf16.gmra.mxu0 %v178
    %v376 = vpop.f32.mrf.mxu0
    %v377 = vadd.f32 %v116, %v376
    %v378 = vpop.f32.mrf.mxu0
    %v379 = vpop.f32.mrf.mxu0
    %v380 = vadd.f32 %v116, %v379
    %v381 = vpop.f32.mrf.mxu0
    %382 = vmatprep.mubr.bf16.mxu0 %v181
    %383 = vmatmul.mubr.bf16.gmra.mxu0 %v180
    %v384 = vpop.f32.mrf.mxu0
    %v385 = vadd.f32 %v116, %v384
    %v386 = vpop.f32.mrf.mxu0
    %v387 = vpop.f32.mrf.mxu0
    %v388 = vadd.f32 %v116, %v387
    %v389 = vpop.f32.mrf.mxu0
    %390 = vdwg.mxu0
    %v391 = vmul.f32 %v329, 0.5
    %v392 = vmul.f32 %v332, 0.5
    %v393 = vmul.f32 %v337, 0.5
    %v394 = vmul.f32 %v340, 0.5
    %v395 = vmul.f32 %v345, 0.5
    %v396 = vmul.f32 %v348, 0.5
    %v397 = vmul.f32 %v353, 0.5
    %v398 = vmul.f32 %v356, 0.5
    %v399 = vmul.f32 %v361, 0.5
    %v400 = vmul.f32 %v364, 0.5
    %v401 = vmul.f32 %v369, 0.5
    %v402 = vmul.f32 %v372, 0.5
    %v403 = vmul.f32 %v377, 0.5
    %v404 = vmul.f32 %v380, 0.5
    %v405 = vmul.f32 %v385, 0.5
    %v406 = vmul.f32 %v388, 0.5
    %v407 = vmul.f32 %v329, 0.044715
    %v408 = vmul.f32 %v332, 0.044715
    %v409 = vmul.f32 %v337, 0.044715
    %v410 = vmul.f32 %v340, 0.044715
    %v411 = vmul.f32 %v345, 0.044715
    %v412 = vmul.f32 %v348, 0.044715
    %v413 = vmul.f32 %v353, 0.044715
    %v414 = vmul.f32 %v356, 0.044715
    %v415 = vmul.f32 %v361, 0.044715
    %v416 = vmul.f32 %v364, 0.044715
    %v417 = vmul.f32 %v369, 0.044715
    %v418 = vmul.f32 %v372, 0.044715
    %v419 = vmul.f32 %v377, 0.044715
    %v420 = vmul.f32 %v380, 0.044715
    %v421 = vmul.f32 %v385, 0.044715
    %v422 = vmul.f32 %v388, 0.044715
    %v423 = vmul.f32 %v407, %v329
    %v424 = vmul.f32 %v408, %v332
    %v425 = vmul.f32 %v409, %v337
    %v426 = vmul.f32 %v410, %v340
    %v427 = vmul.f32 %v411, %v345
    %v428 = vmul.f32 %v412, %v348
    %v429 = vmul.f32 %v413, %v353
    %v430 = vmul.f32 %v414, %v356
    %v431 = vmul.f32 %v415, %v361
    %v432 = vmul.f32 %v416, %v364
    %v433 = vmul.f32 %v417, %v369
    %v434 = vmul.f32 %v418, %v372
    %v435 = vmul.f32 %v419, %v377
    %v436 = vmul.f32 %v420, %v380
    %v437 = vmul.f32 %v421, %v385
    %v438 = vmul.f32 %v422, %v388
    %v439 = vmul.f32 %v423, %v329
    %v440 = vmul.f32 %v424, %v332
    %v441 = vmul.f32 %v425, %v337
    %v442 = vmul.f32 %v426, %v340
    %v443 = vmul.f32 %v427, %v345
    %v444 = vmul.f32 %v428, %v348
    %v445 = vmul.f32 %v429, %v353
    %v446 = vmul.f32 %v430, %v356
    %v447 = vmul.f32 %v431, %v361
    %v448 = vmul.f32 %v432, %v364
    %v449 = vmul.f32 %v433, %v369
    %v450 = vmul.f32 %v434, %v372
    %v451 = vmul.f32 %v435, %v377
    %v452 = vmul.f32 %v436, %v380
    %v453 = vmul.f32 %v437, %v385
    %v454 = vmul.f32 %v438, %v388
    %v455 = vadd.f32 %v329, %v439
    %v456 = vadd.f32 %v332, %v440
    %v457 = vadd.f32 %v337, %v441
    %v458 = vadd.f32 %v340, %v442
    %v459 = vadd.f32 %v345, %v443
    %v460 = vadd.f32 %v348, %v444
    %v461 = vadd.f32 %v353, %v445
    %v462 = vadd.f32 %v356, %v446
    %v463 = vadd.f32 %v361, %v447
    %v464 = vadd.f32 %v364, %v448
    %v465 = vadd.f32 %v369, %v449
    %v466 = vadd.f32 %v372, %v450
    %v467 = vadd.f32 %v377, %v451
    %v468 = vadd.f32 %v380, %v452
    %v469 = vadd.f32 %v385, %v453
    %v470 = vadd.f32 %v388, %v454
    %v471 = vmul.f32 %v455, 0.7978846
    %v472 = vmul.f32 %v456, 0.7978846
    %v473 = vmul.f32 %v457, 0.7978846
    %v474 = vmul.f32 %v458, 0.7978846
    %v475 = vmul.f32 %v459, 0.7978846
    %v476 = vmul.f32 %v460, 0.7978846
    %v477 = vmul.f32 %v461, 0.7978846
    %v478 = vmul.f32 %v462, 0.7978846
    %v479 = vmul.f32 %v463, 0.7978846
    %v480 = vmul.f32 %v464, 0.7978846
    %v481 = vmul.f32 %v465, 0.7978846
    %v482 = vmul.f32 %v466, 0.7978846
    %v483 = vmul.f32 %v467, 0.7978846
    %v484 = vmul.f32 %v468, 0.7978846
    %v485 = vmul.f32 %v469, 0.7978846
    %v486 = vmul.f32 %v470, 0.7978846
    %v487 = vtanh.pop %v471
    %v488 = vtanh.pop %v472
    %v489 = vtanh.pop %v473
    %v490 = vtanh.pop %v474
    %v491 = vtanh.pop %v475
    %v492 = vtanh.pop %v476
    %v493 = vtanh.pop %v477
    %v494 = vtanh.pop %v478
    %v495 = vtanh.pop %v479
    %v496 = vtanh.pop %v480
    %v497 = vtanh.pop %v481
    %v498 = vtanh.pop %v482
    %v499 = vtanh.pop %v483
    %v500 = vtanh.pop %v484
    %v501 = vtanh.pop %v485
    %v502 = vtanh.pop %v486
    %v503 = vadd.f32 %v487, 1.0
    %v504 = vadd.f32 %v488, 1.0
    %v505 = vadd.f32 %v489, 1.0
    %v506 = vadd.f32 %v490, 1.0
    %v507 = vadd.f32 %v491, 1.0
    %v508 = vadd.f32 %v492, 1.0
    %v509 = vadd.f32 %v493, 1.0
    %v510 = vadd.f32 %v494, 1.0
    %v511 = vadd.f32 %v495, 1.0
    %v512 = vadd.f32 %v496, 1.0
    %v513 = vadd.f32 %v497, 1.0
    %v514 = vadd.f32 %v498, 1.0
    %v515 = vadd.f32 %v499, 1.0
    %v516 = vadd.f32 %v500, 1.0
    %v517 = vadd.f32 %v501, 1.0
    %v518 = vadd.f32 %v502, 1.0
    %v519 = vmul.f32 %v391, %v503
    %v520 = vmul.f32 %v392, %v504
    %v521 = vmul.f32 %v393, %v505
    %v522 = vmul.f32 %v394, %v506
    %v523 = vmul.f32 %v395, %v507
    %v524 = vmul.f32 %v396, %v508
    %v525 = vmul.f32 %v397, %v509
    %v526 = vmul.f32 %v398, %v510
    %v527 = vmul.f32 %v399, %v511
    %v528 = vmul.f32 %v400, %v512
    %v529 = vmul.f32 %v401, %v513
    %v530 = vmul.f32 %v402, %v514
    %v531 = vmul.f32 %v403, %v515
    %v532 = vmul.f32 %v404, %v516
    %v533 = vmul.f32 %v405, %v517
    %v534 = vmul.f32 %v406, %v518
    %v535 = vpack.c.bf16 %v520, %v519
    %v536 = vpack.c.bf16 %v522, %v521
    %v537 = vpack.c.bf16 %v524, %v523
    %v538 = vpack.c.bf16 %v526, %v525
    %v539 = vpack.c.bf16 %v528, %v527
    %v540 = vpack.c.bf16 %v530, %v529
    %v541 = vpack.c.bf16 %v532, %v531
    %v542 = vpack.c.bf16 %v534, %v533
    %v543 = vld [vmem:[#allocation7] sm:$0xff]
    %v544 = vld [vmem:[#allocation7 + $0x8] sm:$0xff]
    %v545 = vld [vmem:[#allocation7 + $0x10] sm:$0xff]
    %v546 = vld [vmem:[#allocation7 + $0x18] sm:$0xff]
    %v547 = vld [vmem:[#allocation7 + $0x20] sm:$0xff]
    %v548 = vld [vmem:[#allocation7 + $0x28] sm:$0xff]
    %v549 = vld [vmem:[#allocation7 + $0x30] sm:$0xff]
    %v550 = vld [vmem:[#allocation7 + $0x38] sm:$0xff]
    %v551 = vld [vmem:[#allocation7 + $0x40] sm:$0xff]
    %v552 = vld [vmem:[#allocation7 + $0x48] sm:$0xff]
    %v553 = vld [vmem:[#allocation7 + $0x50] sm:$0xff]
    %v554 = vld [vmem:[#allocation7 + $0x58] sm:$0xff]
    %v555 = vld [vmem:[#allocation7 + $0x60] sm:$0xff]
    %v556 = vld [vmem:[#allocation7 + $0x68] sm:$0xff]
    %v557 = vld [vmem:[#allocation7 + $0x70] sm:$0xff]
    %v558 = vld [vmem:[#allocation7 + $0x78] sm:$0xff]
    %v559 = vld [vmem:[%s4] sm:$0x3]
    %v561 = vlaneseq
    %v562 = vshrl.u32 %v561, 7
    %v563 = vsub.s32 0, %v562
    %v564 = vrot.slane %v559, %v563
    %v565 = vlaneseq
    %v566 = vshrl.u32 %v565, 7
    %v567 = vsub.s32 1, %v566
    %v568 = vrot.slane %v559, %v567
    %v587 = vunpack.c.l.b16 %v543
    %v588 = vunpack.c.h.b16 %v543
    %v589 = vunpack.c.l.b16 %v544
    %v590 = vunpack.c.h.b16 %v544
    %v591 = vunpack.c.l.b16 %v545
    %v592 = vunpack.c.h.b16 %v545
    %v593 = vunpack.c.l.b16 %v546
    %v594 = vunpack.c.h.b16 %v546
    %v595 = vunpack.c.l.b16 %v547
    %v596 = vunpack.c.h.b16 %v547
    %v597 = vunpack.c.l.b16 %v548
    %v598 = vunpack.c.h.b16 %v548
    %v599 = vunpack.c.l.b16 %v549
    %v600 = vunpack.c.h.b16 %v549
    %v601 = vunpack.c.l.b16 %v550
    %v602 = vunpack.c.h.b16 %v550
    %v603 = vunpack.c.l.b16 %v551
    %v604 = vunpack.c.h.b16 %v551
    %v605 = vunpack.c.l.b16 %v552
    %v606 = vunpack.c.h.b16 %v552
    %v607 = vunpack.c.l.b16 %v553
    %v608 = vunpack.c.h.b16 %v553
    %v609 = vunpack.c.l.b16 %v554
    %v610 = vunpack.c.h.b16 %v554
    %v611 = vunpack.c.l.b16 %v555
    %v612 = vunpack.c.h.b16 %v555
    %v613 = vunpack.c.l.b16 %v556
    %v614 = vunpack.c.h.b16 %v556
    %v615 = vunpack.c.l.b16 %v557
    %v616 = vunpack.c.h.b16 %v557
    %v617 = vunpack.c.l.b16 %v558
    %v618 = vunpack.c.h.b16 %v558
    %v619 = vpack.c.b16 %v589, %v587
    %v620 = vpack.c.b16 %v590, %v588
    %v621 = vpack.c.b16 %v593, %v591
    %v622 = vpack.c.b16 %v594, %v592
    %v623 = vpack.c.b16 %v597, %v595
    %v624 = vpack.c.b16 %v598, %v596
    %v625 = vpack.c.b16 %v601, %v599
    %v626 = vpack.c.b16 %v602, %v600
    %v627 = vpack.c.b16 %v605, %v603
    %v628 = vpack.c.b16 %v606, %v604
    %v629 = vpack.c.b16 %v609, %v607
    %v630 = vpack.c.b16 %v610, %v608
    %v631 = vpack.c.b16 %v613, %v611
    %v632 = vpack.c.b16 %v614, %v612
    %v633 = vpack.c.b16 %v617, %v615
    %v634 = vpack.c.b16 %v618, %v616
    %651 = vmatprep.subr.bf16.mxu0 %v634
    %652 = vmatpush1.bf16.msra.mxu0 %v633
    %653 = vmatprep.subr.bf16.mxu0 %v632
    %654 = vmatpush1.bf16.msra.mxu0 %v631
    %655 = vmatprep.subr.bf16.mxu0 %v630
    %656 = vmatpush1.bf16.msra.mxu0 %v629
    %657 = vmatprep.subr.bf16.mxu0 %v628
    %658 = vmatpush1.bf16.msra.mxu0 %v627
    %659 = vmatprep.subr.bf16.mxu0 %v626
    %660 = vmatpush1.bf16.msra.mxu0 %v625
    %661 = vmatprep.subr.bf16.mxu0 %v624
    %662 = vmatpush1.bf16.msra.mxu0 %v623
    %663 = vmatprep.subr.bf16.mxu0 %v622
    %664 = vmatpush1.bf16.msra.mxu0 %v621
    %665 = vmatprep.subr.bf16.mxu0 %v620
    %666 = vmatpush1.bf16.msra.mxu0 %v619
    %667 = vmatprep.subr.bf16.mxu0 0
    %668 = vmatpush2.bf16.msra.mxu0 0
    %669 = vmatprep.subr.bf16.mxu0 0
    %670 = vmatpush2.bf16.msra.mxu0 0
    %671 = vmatprep.subr.bf16.mxu0 0
    %672 = vmatpush2.bf16.msra.mxu0 0
    %673 = vmatprep.subr.bf16.mxu0 0
    %674 = vmatpush2.bf16.msra.mxu0 0
    %675 = vmatprep.subr.bf16.mxu0 0
    %676 = vmatpush2.bf16.msra.mxu0 0
    %677 = vmatprep.subr.bf16.mxu0 0
    %678 = vmatpush2.bf16.msra.mxu0 0
    %679 = vmatprep.subr.bf16.mxu0 0
    %680 = vmatpush2.bf16.msra.mxu0 0
    %681 = vmatprep.subr.bf16.mxu0 0
    %682 = vmatpush2.bf16.msra.mxu0 0
    %683 = vmatprep.mubr.bf16.mxu0 0
    %684 = vmatmul.mubr.bf16.gmra.mxu0 %v535
    %v685 = vpop.f32.mrf.mxu0
    %v686 = vadd.f32 %v564, %v685
    %v687 = vpop.f32.mrf.mxu0
    %v688 = vadd.f32 %v568, %v687
    %v689 = vpop.f32.mrf.mxu0
    %v690 = vadd.f32 %v564, %v689
    %v691 = vpop.f32.mrf.mxu0
    %v692 = vadd.f32 %v568, %v691
    %693 = vmatprep.mubr.bf16.mxu0 0
    %694 = vmatmul.mubr.bf16.gmra.mxu0 %v536
    %v695 = vpop.f32.mrf.mxu0
    %v696 = vadd.f32 %v564, %v695
    %v697 = vpop.f32.mrf.mxu0
    %v698 = vadd.f32 %v568, %v697
    %v699 = vpop.f32.mrf.mxu0
    %v700 = vadd.f32 %v564, %v699
    %v701 = vpop.f32.mrf.mxu0
    %v702 = vadd.f32 %v568, %v701
    %703 = vmatprep.mubr.bf16.mxu0 0
    %704 = vmatmul.mubr.bf16.gmra.mxu0 %v537
    %v705 = vpop.f32.mrf.mxu0
    %v706 = vadd.f32 %v564, %v705
    %v707 = vpop.f32.mrf.mxu0
    %v708 = vadd.f32 %v568, %v707
    %v709 = vpop.f32.mrf.mxu0
    %v710 = vadd.f32 %v564, %v709
    %v711 = vpop.f32.mrf.mxu0
    %v712 = vadd.f32 %v568, %v711
    %713 = vmatprep.mubr.bf16.mxu0 0
    %714 = vmatmul.mubr.bf16.gmra.mxu0 %v538
    %v715 = vpop.f32.mrf.mxu0
    %v716 = vadd.f32 %v564, %v715
    %v717 = vpop.f32.mrf.mxu0
    %v718 = vadd.f32 %v568, %v717
    %v719 = vpop.f32.mrf.mxu0
    %v720 = vadd.f32 %v564, %v719
    %v721 = vpop.f32.mrf.mxu0
    %v722 = vadd.f32 %v568, %v721
    %723 = vmatprep.mubr.bf16.mxu0 0
    %724 = vmatmul.mubr.bf16.gmra.mxu0 %v539
    %v725 = vpop.f32.mrf.mxu0
    %v726 = vadd.f32 %v564, %v725
    %v727 = vpop.f32.mrf.mxu0
    %v728 = vadd.f32 %v568, %v727
    %v729 = vpop.f32.mrf.mxu0
    %v730 = vadd.f32 %v564, %v729
    %v731 = vpop.f32.mrf.mxu0
    %v732 = vadd.f32 %v568, %v731
    %733 = vmatprep.mubr.bf16.mxu0 0
    %734 = vmatmul.mubr.bf16.gmra.mxu0 %v540
    %v735 = vpop.f32.mrf.mxu0
    %v736 = vadd.f32 %v564, %v735
    %v737 = vpop.f32.mrf.mxu0
    %v738 = vadd.f32 %v568, %v737
    %v739 = vpop.f32.mrf.mxu0
    %v740 = vadd.f32 %v564, %v739
    %v741 = vpop.f32.mrf.mxu0
    %v742 = vadd.f32 %v568, %v741
    %743 = vmatprep.mubr.bf16.mxu0 0
    %744 = vmatmul.mubr.bf16.gmra.mxu0 %v541
    %v745 = vpop.f32.mrf.mxu0
    %v746 = vadd.f32 %v564, %v745
    %v747 = vpop.f32.mrf.mxu0
    %v748 = vadd.f32 %v568, %v747
    %v749 = vpop.f32.mrf.mxu0
    %v750 = vadd.f32 %v564, %v749
    %v751 = vpop.f32.mrf.mxu0
    %v752 = vadd.f32 %v568, %v751
    %753 = vmatprep.mubr.bf16.mxu0 0
    %754 = vmatmul.mubr.bf16.gmra.mxu0 %v542
    %v755 = vpop.f32.mrf.mxu0
    %v756 = vadd.f32 %v564, %v755
    %v757 = vpop.f32.mrf.mxu0
    %v758 = vadd.f32 %v568, %v757
    %v759 = vpop.f32.mrf.mxu0
    %v760 = vadd.f32 %v564, %v759
    %v761 = vpop.f32.mrf.mxu0
    %v762 = vadd.f32 %v568, %v761
    %763 = vdwg.mxu0
    %764 = vst [vmem:[#allocation8] sm:$0xff] %v686
    %765 = vst [vmem:[#allocation8 + $0x8] sm:$0xff] %v688
    %766 = vst [vmem:[#allocation8 + $0x10] sm:$0xff] %v690
    %767 = vst [vmem:[#allocation8 + $0x18] sm:$0xff] %v692
    %768 = vst [vmem:[#allocation8 + $0x20] sm:$0xff] %v696
    %769 = vst [vmem:[#allocation8 + $0x28] sm:$0xff] %v698
    %770 = vst [vmem:[#allocation8 + $0x30] sm:$0xff] %v700
    %771 = vst [vmem:[#allocation8 + $0x38] sm:$0xff] %v702
    %772 = vst [vmem:[#allocation8 + $0x40] sm:$0xff] %v706
    %773 = vst [vmem:[#allocation8 + $0x48] sm:$0xff] %v708
    %774 = vst [vmem:[#allocation8 + $0x50] sm:$0xff] %v710
    %775 = vst [vmem:[#allocation8 + $0x58] sm:$0xff] %v712
    %776 = vst [vmem:[#allocation8 + $0x60] sm:$0xff] %v716
    %777 = vst [vmem:[#allocation8 + $0x68] sm:$0xff] %v718
    %778 = vst [vmem:[#allocation8 + $0x70] sm:$0xff] %v720
    %779 = vst [vmem:[#allocation8 + $0x78] sm:$0xff] %v722
    %780 = vst [vmem:[#allocation8 + $0x80] sm:$0xff] %v726
    %781 = vst [vmem:[#allocation8 + $0x88] sm:$0xff] %v728
    %782 = vst [vmem:[#allocation8 + $0x90] sm:$0xff] %v730
    %783 = vst [vmem:[#allocation8 + $0x98] sm:$0xff] %v732
    %784 = vst [vmem:[#allocation8 + $0xa0] sm:$0xff] %v736
    %785 = vst [vmem:[#allocation8 + $0xa8] sm:$0xff] %v738
    %786 = vst [vmem:[#allocation8 + $0xb0] sm:$0xff] %v740
    %787 = vst [vmem:[#allocation8 + $0xb8] sm:$0xff] %v742
    %788 = vst [vmem:[#allocation8 + $0xc0] sm:$0xff] %v746
    %789 = vst [vmem:[#allocation8 + $0xc8] sm:$0xff] %v748
    %790 = vst [vmem:[#allocation8 + $0xd0] sm:$0xff] %v750
    %791 = vst [vmem:[#allocation8 + $0xd8] sm:$0xff] %v752
    %792 = vst [vmem:[#allocation8 + $0xe0] sm:$0xff] %v756
    %793 = vst [vmem:[#allocation8 + $0xe8] sm:$0xff] %v758
    %794 = vst [vmem:[#allocation8 + $0xf0] sm:$0xff] %v760
    %795 = vst [vmem:[#allocation8 + $0xf8] sm:$0xff] %v762
    // Predicated region
    $region34: #{tpu_custom_call.1} parent=1 // pred_check
      _
    $region35: #{tpu_custom_call.1} parent=1 // pred_check_branch
      %797 = sbr.rel (0) target = $region37
    $region36: #{tpu_custom_call.1} parent=1 // pred_region
      %s799 = ssub.s32 4096, 4096
      %800 = vsyncadd [#allocation4], %s799
      %s801 = sshll.u32 [#allocation8], 4
      %s802 = int_to_ptr.vmem [resolvable:$true] %s801
      %807 = dma.vmem_to_hbm [thread:$0]  %s802, 4096, %s5, [#allocation4], 256, 256, 16
    $region37: #{tpu_custom_call.1} parent=1 // pred_fallthru
      _
    // Predicated region
    $region38: #{tpu_custom_call.1} parent=1 // pred_check
      _
    $region39: #{tpu_custom_call.1} parent=1 // pred_check_branch
      %809 = sbr.rel (0) target = $region41
    $region40: #{tpu_custom_call.1} parent=1 // pred_region
      %810 = dma.done [#allocation4], 4096
    $region41: #{tpu_custom_call.1} parent=1 // pred_fallthru
      _
    %811 = vsyncpa [#allocation3], 1
    %812 = vsyncpa [#allocation6], 1
    %813 = vsyncpa [#allocation4], 1

</llo_original>
